<compile_context>
chip_gen: v6e
topology: v6e:2x2x1
jax: 0.10.0
libtpu: 0.0.40
codegen_flags: <defaults>
</compile_context>

<pallas_src>
import jax
import jax.numpy as jnp
from jax.experimental import pallas as pl
from jax.experimental.pallas import tpu as pltpu

# ----------------------------- config ---------------------------------------
BATCH = 8
DIM_Y = 16
DIM_X = 16
NUM_OF_OUTPUT = DIM_Y + DIM_X      # fc1 input dim (cat along axis=1)
HIDDEN = 32                        # gan_hidden_dim
NUM_LAYERS = 2                     # self.layer
PDROP = 0.1                        # unused in forward (Dropout never applied)

# --------------------- packed-parameter slab layout --------------------------
# One f32 array of shape (R_TOTAL, HIDDEN); rows:
OFF_W1 = 0                                   # w1: (NUM_OF_OUTPUT, H)
OFF_WH = OFF_W1 + NUM_OF_OUTPUT              # wh: (NUM_LAYERS*H, H)
OFF_B1 = OFF_WH + NUM_LAYERS * HIDDEN        # b1: (1, H)
OFF_BH = OFF_B1 + 1                          # bh: (NUM_LAYERS, H)
OFF_WO = OFF_BH + NUM_LAYERS                 # wo^T: (1, H)
OFF_BO = OFF_WO + 1                          # bo broadcast: (1, H)
R_TOTAL = OFF_BO + 1


# ----------------------------- kernel ---------------------------------------
def dis2_kernel(y_ref, x_ref, p_ref, o_ref):
    # fc1 on the fused concat: [y | x] @ W1 + b1  ==  y @ W1[:DY] + x @ W1[DY:] + b1
    w1y = p_ref[OFF_W1:OFF_W1 + DIM_Y, :]
    w1x = p_ref[OFF_W1 + DIM_Y:OFF_W1 + NUM_OF_OUTPUT, :]
    b1 = p_ref[OFF_B1:OFF_B1 + 1, :]
    r = (jnp.dot(y_ref[...], w1y, preferred_element_type=jnp.float32)
         + jnp.dot(x_ref[...], w1x, preferred_element_type=jnp.float32)
         + b1)

    # hidden stack: relu(Linear(r))  (static unroll, traced once)
    for k in range(NUM_LAYERS):
        wh = p_ref[OFF_WH + k * HIDDEN:OFF_WH + (k + 1) * HIDDEN, :]
        bh = p_ref[OFF_BH + k:OFF_BH + k + 1, :]
        r = jnp.maximum(
            jnp.dot(r, wh, preferred_element_type=jnp.float32) + bh, 0.0)

    # output head: r @ wo + bo, with wo stored transposed as a lane row so the
    # (H x 1) matmul becomes a cross-lane reduce (XLU) instead of a lane-sparse MXU op.
    wo_row = p_ref[OFF_WO:OFF_WO + 1, :]          # (1, H) == wo^T
    bo = p_ref[OFF_BO:OFF_BO + 1, 0:1]            # (1, 1)
    logits = jnp.sum(r * wo_row, axis=-1, keepdims=True) + bo

    o_ref[...] = jax.nn.sigmoid(logits)           # exp + recip on the EUP slot


# ----------------------------- wrapper ---------------------------------------
def dis2_forward(y, x, packed_params):
    """y: [B, DIM_Y], x: [B, DIM_X], packed_params: [R_TOTAL, H] -> [B, 1]."""
    B = y.shape[0]
    tile_b = B if B <= 128 else 128
    assert B % tile_b == 0, "batch must be a multiple of the batch tile"
    grid = (B // tile_b,)
    return pl.pallas_call(
        dis2_kernel,
        out_shape=jax.ShapeDtypeStruct((B, 1), jnp.float32),
        grid_spec=pltpu.PrefetchScalarGridSpec(
            num_scalar_prefetch=0,
            grid=grid,
            in_specs=[
                pl.BlockSpec((tile_b, DIM_Y), lambda i: (i, 0)),
                pl.BlockSpec((tile_b, DIM_X), lambda i: (i, 0)),
                # single parameter slab; constant block index -> stays resident
                pl.BlockSpec((R_TOTAL, HIDDEN), lambda i: (0, 0)),
            ],
            out_specs=pl.BlockSpec((tile_b, 1), lambda i: (i, 0)),
        ),
        compiler_params=pltpu.CompilerParams(
            dimension_semantics=("parallel",)),   # shards batch across TCs on v7x
    )(y, x, packed_params)


# ----------------------------- params ----------------------------------------
def init_params(key):
    """Deterministic synthetic init matching nn.Linear shapes (stored transposed)."""
    ks = jax.random.split(key, 6)
    scale1 = 1.0 / jnp.sqrt(NUM_OF_OUTPUT)
    scaleh = 1.0 / jnp.sqrt(HIDDEN)
    w1 = jax.random.uniform(ks[0], (NUM_OF_OUTPUT, HIDDEN), jnp.float32,
                            -scale1, scale1)
    b1 = jax.random.uniform(ks[1], (1, HIDDEN), jnp.float32, -scale1, scale1)
    wh = jax.random.uniform(ks[2], (NUM_LAYERS, HIDDEN, HIDDEN), jnp.float32,
                            -scaleh, scaleh)
    bh = jax.random.uniform(ks[3], (NUM_LAYERS, 1, HIDDEN), jnp.float32,
                            -scaleh, scaleh)
    wo = jax.random.uniform(ks[4], (HIDDEN, 1), jnp.float32, -scaleh, scaleh)
    bo = jax.random.uniform(ks[5], (1, 1), jnp.float32, -scaleh, scaleh)
    return (w1, b1, wh, bh, wo, bo)


def pack_params(params):
    """Pack all parameters into one contiguous [R_TOTAL, HIDDEN] f32 slab (done once)."""
    w1, b1, wh, bh, wo, bo = params
    slab = jnp.concatenate([
        w1,                                        # rows [OFF_W1, OFF_WH)
        wh.reshape(NUM_LAYERS * HIDDEN, HIDDEN),   # rows [OFF_WH, OFF_B1)
        b1,                                        # row  OFF_B1
        bh.reshape(NUM_LAYERS, HIDDEN),            # rows [OFF_BH, OFF_WO)
        wo.T,                                      # row  OFF_WO  (wo^T)
        jnp.broadcast_to(bo, (1, HIDDEN)),         # row  OFF_BO
    ], axis=0)
    assert slab.shape == (R_TOTAL, HIDDEN)
    return slab


def reference_forward(y, x, params):
    """Pure-JAX reference for a sanity check."""
    w1, b1, wh, bh, wo, bo = params
    r = jnp.concatenate([y, x], axis=1) @ w1 + b1
    for k in range(NUM_LAYERS):
        r = jnp.maximum(r @ wh[k] + bh[k], 0.0)
    return jax.nn.sigmoid(r @ wo + bo)


if __name__ == "__main__":
    key = jax.random.PRNGKey(0)
    k_y, k_x, k_p = jax.random.split(key, 3)
    y = jax.random.normal(k_y, (BATCH, DIM_Y), jnp.float32)
    x = jax.random.normal(k_x, (BATCH, DIM_X), jnp.float32)
    params = init_params(k_p)
    packed = jax.block_until_ready(pack_params(params))  # packed once, outside the fwd

    out = dis2_forward(y, x, packed)
    out = jax.block_until_ready(out)

    ref = reference_forward(y, x, params)
    assert out.shape == (BATCH, 1), out.shape
    assert jnp.allclose(out, ref, atol=1e-5, rtol=1e-5), (out, ref)
    print("KERNEL_OK")
</pallas_src>

<mosaic_0001>
module attributes {stable_mosaic.version = 11 : i64} {
  func.func @dis2_kernel(%arg0: i32, %arg1: memref<8x16xf32, #tpu.memory_space<vmem>>, %arg2: memref<8x16xf32, #tpu.memory_space<vmem>>, %arg3: memref<101x32xf32, #tpu.memory_space<vmem>>, %arg4: memref<8x1xf32, #tpu.memory_space<vmem>>) attributes {dimension_semantics = [#tpu.dimension_semantics<parallel>], iteration_bounds = array<i64: 1>, scalar_prefetch = 0 : i64, scratch_operands = 0 : i64, tpu.core_type = #tpu.core_type<tc>, window_params = [{transform_indices = @transform_0, window_bounds = array<i64: 8, 16>}, {transform_indices = @transform_1, window_bounds = array<i64: 8, 16>}, {pipeline_mode = #tpu.pipeline_mode<synchronous>, transform_indices = @transform_2, window_bounds = array<i64: 101, 32>}, {transform_indices = @transform_3, window_bounds = array<i64: 8, 1>}]} {
    %c0 = arith.constant 0 : index
    %c0_0 = arith.constant 0 : index
    %0 = vector.load %arg3[%c0, %c0_0] : memref<101x32xf32, #tpu.memory_space<vmem>>, vector<16x32xf32>
    %c16 = arith.constant 16 : index
    %c0_1 = arith.constant 0 : index
    %1 = vector.load %arg3[%c16, %c0_1] : memref<101x32xf32, #tpu.memory_space<vmem>>, vector<16x32xf32>
    %c96 = arith.constant 96 : index
    %c0_2 = arith.constant 0 : index
    %2 = vector.load %arg3[%c96, %c0_2] : memref<101x32xf32, #tpu.memory_space<vmem>>, vector<1x32xf32>
    %c0_3 = arith.constant 0 : index
    %c0_4 = arith.constant 0 : index
    %3 = vector.load %arg1[%c0_3, %c0_4] : memref<8x16xf32, #tpu.memory_space<vmem>>, vector<8x16xf32>
    %cst = arith.constant dense<0.000000e+00> : vector<8x32xf32>
    %4 = tpu.matmul %3, %0, %cst {dimension_numbers = #tpu.dot_dimension_numbers<[1], [0], [0], [1], [0, 0, 1, 1], [], []>} : vector<8x16xf32>, vector<16x32xf32>, vector<8x32xf32> -> vector<8x32xf32>
    %c0_5 = arith.constant 0 : index
    %c0_6 = arith.constant 0 : index
    %5 = vector.load %arg2[%c0_5, %c0_6] : memref<8x16xf32, #tpu.memory_space<vmem>>, vector<8x16xf32>
    %cst_7 = arith.constant dense<0.000000e+00> : vector<8x32xf32>
    %6 = tpu.matmul %5, %1, %cst_7 {dimension_numbers = #tpu.dot_dimension_numbers<[1], [0], [0], [1], [0, 0, 1, 1], [], []>} : vector<8x16xf32>, vector<16x32xf32>, vector<8x32xf32> -> vector<8x32xf32>
    %7 = arith.addf %4, %6 : vector<8x32xf32>
    %8 = vector.broadcast %2 : vector<1x32xf32> to vector<8x32xf32>
    %9 = arith.addf %7, %8 : vector<8x32xf32>
    %c32 = arith.constant 32 : index
    %c0_8 = arith.constant 0 : index
    %10 = vector.load %arg3[%c32, %c0_8] : memref<101x32xf32, #tpu.memory_space<vmem>>, vector<32x32xf32>
    %c97 = arith.constant 97 : index
    %c0_9 = arith.constant 0 : index
    %11 = vector.load %arg3[%c97, %c0_9] : memref<101x32xf32, #tpu.memory_space<vmem>>, vector<1x32xf32>
    %cst_10 = arith.constant dense<0.000000e+00> : vector<8x32xf32>
    %12 = tpu.matmul %9, %10, %cst_10 {dimension_numbers = #tpu.dot_dimension_numbers<[1], [0], [0], [1], [0, 0, 1, 1], [], []>} : vector<8x32xf32>, vector<32x32xf32>, vector<8x32xf32> -> vector<8x32xf32>
    %13 = vector.broadcast %11 : vector<1x32xf32> to vector<8x32xf32>
    %14 = arith.addf %12, %13 : vector<8x32xf32>
    %cst_11 = arith.constant 0.000000e+00 : f32
    %15 = vector.broadcast %cst_11 : f32 to vector<8x32xf32>
    %16 = arith.maximumf %14, %15 : vector<8x32xf32>
    %c64 = arith.constant 64 : index
    %c0_12 = arith.constant 0 : index
    %17 = vector.load %arg3[%c64, %c0_12] : memref<101x32xf32, #tpu.memory_space<vmem>>, vector<32x32xf32>
    %c98 = arith.constant 98 : index
    %c0_13 = arith.constant 0 : index
    %18 = vector.load %arg3[%c98, %c0_13] : memref<101x32xf32, #tpu.memory_space<vmem>>, vector<1x32xf32>
    %cst_14 = arith.constant dense<0.000000e+00> : vector<8x32xf32>
    %19 = tpu.matmul %16, %17, %cst_14 {dimension_numbers = #tpu.dot_dimension_numbers<[1], [0], [0], [1], [0, 0, 1, 1], [], []>} : vector<8x32xf32>, vector<32x32xf32>, vector<8x32xf32> -> vector<8x32xf32>
    %20 = vector.broadcast %18 : vector<1x32xf32> to vector<8x32xf32>
    %21 = arith.addf %19, %20 : vector<8x32xf32>
    %cst_15 = arith.constant 0.000000e+00 : f32
    %22 = vector.broadcast %cst_15 : f32 to vector<8x32xf32>
    %23 = arith.maximumf %21, %22 : vector<8x32xf32>
    %c99 = arith.constant 99 : index
    %c0_16 = arith.constant 0 : index
    %24 = vector.load %arg3[%c99, %c0_16] : memref<101x32xf32, #tpu.memory_space<vmem>>, vector<1x32xf32>
    %c100 = arith.constant 100 : index
    %c0_17 = arith.constant 0 : index
    %25 = vector.load %arg3[%c100, %c0_17] : memref<101x32xf32, #tpu.memory_space<vmem>>, vector<1x1xf32>
    %26 = vector.broadcast %24 : vector<1x32xf32> to vector<8x32xf32>
    %27 = arith.mulf %23, %26 : vector<8x32xf32>
    %cst_18 = arith.constant dense<0.000000e+00> : vector<8xf32>
    %28 = vector.multi_reduction <add>, %27, %cst_18 [1] : vector<8x32xf32> to vector<8xf32>
    %29 = vector.shape_cast %28 : vector<8xf32> to vector<8x1xf32>
    %30 = vector.broadcast %25 : vector<1x1xf32> to vector<8x1xf32>
    %31 = arith.addf %29, %30 : vector<8x1xf32>
    %32 = arith.negf %31 : vector<8x1xf32>
    %33 = math.exp %32 : vector<8x1xf32>
    %cst_19 = arith.constant 1.000000e+00 : f32
    %34 = vector.broadcast %cst_19 : f32 to vector<8x1xf32>
    %35 = arith.addf %34, %33 : vector<8x1xf32>
    %36 = arith.divf %34, %35 : vector<8x1xf32>
    %c0_20 = arith.constant 0 : index
    %c0_21 = arith.constant 0 : index
    %37 = vector.load %arg4[%c0_20, %c0_21] : memref<8x1xf32, #tpu.memory_space<vmem>>, vector<8x1xf32>
    tpu.vector_store %arg4[%c0_20, %c0_21], %36 {strides = array<i32>} : memref<8x1xf32, #tpu.memory_space<vmem>>, vector<8x1xf32>,
    return
  }
  func.func @transform_0(%arg0: i32) -> (i32, i32) {
    %c0_i32 = arith.constant 0 : i32
    %c0_i32_0 = arith.constant 0 : i32
    return %arg0, %c0_i32 : i32, i32
  }
  func.func @transform_1(%arg0: i32) -> (i32, i32) {
    %c0_i32 = arith.constant 0 : i32
    %c0_i32_0 = arith.constant 0 : i32
    return %arg0, %c0_i32 : i32, i32
  }
  func.func @transform_2(%arg0: i32) -> (i32, i32) {
    %c0_i32 = arith.constant 0 : i32
    %c0_i32_0 = arith.constant 0 : i32
    %c0_i32_1 = arith.constant 0 : i32
    return %c0_i32, %c0_i32_0 : i32, i32
  }
  func.func @transform_3(%arg0: i32) -> (i32, i32) {
    %c0_i32 = arith.constant 0 : i32
    %c0_i32_0 = arith.constant 0 : i32
    return %arg0, %c0_i32 : i32, i32
  }
}

</mosaic_0001>

<llo_original>
// kernel: tpu_custom_call.1
$region0: #{tpu_custom_call.1}
  #allocation0 [shape = 'u32[]', space=smem, size = 0x4, offset = 0x4, fixed_abs, tag = 'smem constant byte address 0x4 - core index']
  #allocation1 [shape = 'u32[144,128]{1,0:T(1,128)}', space=vmem, size = 0x12000, scoped, tag = 'internal scratch']
  %s0 = inlined_call_operand.vmem [shape: f32[8,16], index: 0, kind: input, shape index: {}]
  %s1 = inlined_call_operand.vmem [shape: f32[8,16], index: 1, kind: input, shape index: {}]
  %s2 = inlined_call_operand.vmem [shape: f32[101,32], index: 2, kind: input, shape index: {}]
  %s3 = inlined_call_operand.vmem [shape: f32[8,1], index: 3, kind: output, shape index: {}]
  %s4 = sld [smem:[#allocation0]]
  $region22: #{tpu_custom_call.1} parent=0
    _
  %s6 = ssub.s32 1, %s4
  %s7 = scalar_select 0, %s6, %s4
  // Predicated region
  $region2: #{tpu_custom_call.1} parent=0 // pred_check
    _
  $region3: #{tpu_custom_call.1} parent=0 // pred_check_branch
    %9 = sbr.rel (0) target = $region5
  $region4: #{tpu_custom_call.1} parent=0 // pred_region
    _
  $region5: #{tpu_custom_call.1} parent=0 // pred_fallthru
    _
  // Predicated region
  $region6: #{tpu_custom_call.1} parent=0 // pred_check
    _
  $region7: #{tpu_custom_call.1} parent=0 // pred_check_branch
    %11 = sbr.rel (0) target = $region9
  $region8: #{tpu_custom_call.1} parent=0 // pred_region
    _
  $region9: #{tpu_custom_call.1} parent=0 // pred_fallthru
    _
  // Predicated region
  $region10: #{tpu_custom_call.1} parent=0 // pred_check
    _
  $region11: #{tpu_custom_call.1} parent=0 // pred_check_branch
    %13 = sbr.rel (0) target = $region13
  $region12: #{tpu_custom_call.1} parent=0 // pred_region
    _
  $region13: #{tpu_custom_call.1} parent=0 // pred_fallthru
    _
  %v14 = vld [vmem:[%s2] sm:$0xff]
  %v15 = vld [vmem:[%s2 + $0x8] sm:$0xff]
  %v16 = vld [vmem:[%s2 + $0x10] sm:$0xff]
  %v17 = vld [vmem:[%s2 + $0x18] sm:$0xff]
  %v18 = vld [vmem:[%s2 + $0x60] sm:$0x1]
  %v19 = vld [vmem:[%s0] sm:$0xff]
  %v20 = vld [vmem:[%s1] sm:$0xff]
  %vm21 = vcmask 130048
  %v23 = vsel %vm21, %v20, 0
  %25 = vmatprep.subr.mxu0 0.0
  %26 = vmatpush1.msra.mxu0 0.0
  %27 = vmatprep.subr.mxu0 0.0
  %28 = vmatpush1.msra.mxu0 0.0
  %29 = vmatprep.subr.mxu0 0.0
  %30 = vmatpush1.msra.mxu0 0.0
  %31 = vmatprep.subr.mxu0 0.0
  %32 = vmatpush1.msra.mxu0 0.0
  %33 = vmatprep.subr.mxu0 0.0
  %34 = vmatpush1.msra.mxu0 0.0
  %35 = vmatprep.subr.mxu0 0.0
  %36 = vmatpush1.msra.mxu0 0.0
  %37 = vmatprep.subr.mxu0 0.0
  %38 = vmatpush1.msra.mxu0 0.0
  %39 = vmatprep.subr.mxu0 0.0
  %40 = vmatpush1.msra.mxu0 0.0
  %41 = vmatprep.subr.mxu0 0.0
  %42 = vmatpush1.msra.mxu0 0.0
  %43 = vmatprep.subr.mxu0 0.0
  %44 = vmatpush1.msra.mxu0 0.0
  %45 = vmatprep.subr.mxu0 0.0
  %46 = vmatpush1.msra.mxu0 0.0
  %47 = vmatprep.subr.mxu0 0.0
  %48 = vmatpush1.msra.mxu0 0.0
  %49 = vmatprep.subr.mxu0 0.0
  %50 = vmatpush1.msra.mxu0 0.0
  %51 = vmatprep.subr.mxu0 0.0
  %52 = vmatpush1.msra.mxu0 0.0
  %53 = vmatprep.subr.mxu0 0.0
  %54 = vmatpush1.msra.mxu0 %v17
  %55 = vmatprep.subr.mxu0 0.0
  %56 = vmatpush1.msra.mxu0 %v16
  %57 = vmatprep.subr.mxu0 0.0
  %58 = vmatpush2.msra.mxu0 0.0
  %59 = vmatprep.subr.mxu0 0.0
  %60 = vmatpush2.msra.mxu0 0.0
  %61 = vmatprep.subr.mxu0 0.0
  %62 = vmatpush2.msra.mxu0 0.0
  %63 = vmatprep.subr.mxu0 0.0
  %64 = vmatpush2.msra.mxu0 0.0
  %65 = vmatprep.subr.mxu0 0.0
  %66 = vmatpush2.msra.mxu0 0.0
  %67 = vmatprep.subr.mxu0 0.0
  %68 = vmatpush2.msra.mxu0 0.0
  %69 = vmatprep.subr.mxu0 0.0
  %70 = vmatpush2.msra.mxu0 0.0
  %71 = vmatprep.subr.mxu0 0.0
  %72 = vmatpush2.msra.mxu0 0.0
  %73 = vmatprep.subr.mxu0 0.0
  %74 = vmatpush2.msra.mxu0 0.0
  %75 = vmatprep.subr.mxu0 0.0
  %76 = vmatpush2.msra.mxu0 0.0
  %77 = vmatprep.subr.mxu0 0.0
  %78 = vmatpush2.msra.mxu0 0.0
  %79 = vmatprep.subr.mxu0 0.0
  %80 = vmatpush2.msra.mxu0 0.0
  %81 = vmatprep.subr.mxu0 0.0
  %82 = vmatpush2.msra.mxu0 0.0
  %83 = vmatprep.subr.mxu0 0.0
  %84 = vmatpush2.msra.mxu0 0.0
  %85 = vmatprep.subr.mxu0 0.0
  %86 = vmatpush2.msra.mxu0 0.0
  %87 = vmatprep.subr.mxu0 0.0
  %88 = vmatpush2.msra.mxu0 0.0
  %89 = vmatprep.mubr.f32.mxu0 0.0
  %90 = vmatmul.mubr.f32.gmra.mxu0 %v23
  %v91 = vpop.f32.mrf.mxu0
  %v92 = vadd.f32 0.0, %v91
  %v93 = vpop.f32.mrf.mxu0
  %94 = vdwg.mxu0
  %v96 = vsel %vm21, %v19, 0
  %98 = vmatprep.subr.mxu0 0.0
  %99 = vmatpush1.msra.mxu0 0.0
  %100 = vmatprep.subr.mxu0 0.0
  %101 = vmatpush1.msra.mxu0 0.0
  %102 = vmatprep.subr.mxu0 0.0
  %103 = vmatpush1.msra.mxu0 0.0
  %104 = vmatprep.subr.mxu0 0.0
  %105 = vmatpush1.msra.mxu0 0.0
  %106 = vmatprep.subr.mxu0 0.0
  %107 = vmatpush1.msra.mxu0 0.0
  %108 = vmatprep.subr.mxu0 0.0
  %109 = vmatpush1.msra.mxu0 0.0
  %110 = vmatprep.subr.mxu0 0.0
  %111 = vmatpush1.msra.mxu0 0.0
  %112 = vmatprep.subr.mxu0 0.0
  %113 = vmatpush1.msra.mxu0 0.0
  %114 = vmatprep.subr.mxu0 0.0
  %115 = vmatpush1.msra.mxu0 0.0
  %116 = vmatprep.subr.mxu0 0.0
  %117 = vmatpush1.msra.mxu0 0.0
  %118 = vmatprep.subr.mxu0 0.0
  %119 = vmatpush1.msra.mxu0 0.0
  %120 = vmatprep.subr.mxu0 0.0
  %121 = vmatpush1.msra.mxu0 0.0
  %122 = vmatprep.subr.mxu0 0.0
  %123 = vmatpush1.msra.mxu0 0.0
  %124 = vmatprep.subr.mxu0 0.0
  %125 = vmatpush1.msra.mxu0 0.0
  %126 = vmatprep.subr.mxu0 0.0
  %127 = vmatpush1.msra.mxu0 %v15
  %128 = vmatprep.subr.mxu0 0.0
  %129 = vmatpush1.msra.mxu0 %v14
  %130 = vmatprep.subr.mxu0 0.0
  %131 = vmatpush2.msra.mxu0 0.0
  %132 = vmatprep.subr.mxu0 0.0
  %133 = vmatpush2.msra.mxu0 0.0
  %134 = vmatprep.subr.mxu0 0.0
  %135 = vmatpush2.msra.mxu0 0.0
  %136 = vmatprep.subr.mxu0 0.0
  %137 = vmatpush2.msra.mxu0 0.0
  %138 = vmatprep.subr.mxu0 0.0
  %139 = vmatpush2.msra.mxu0 0.0
  %140 = vmatprep.subr.mxu0 0.0
  %141 = vmatpush2.msra.mxu0 0.0
  %142 = vmatprep.subr.mxu0 0.0
  %143 = vmatpush2.msra.mxu0 0.0
  %144 = vmatprep.subr.mxu0 0.0
  %145 = vmatpush2.msra.mxu0 0.0
  %146 = vmatprep.subr.mxu0 0.0
  %147 = vmatpush2.msra.mxu0 0.0
  %148 = vmatprep.subr.mxu0 0.0
  %149 = vmatpush2.msra.mxu0 0.0
  %150 = vmatprep.subr.mxu0 0.0
  %151 = vmatpush2.msra.mxu0 0.0
  %152 = vmatprep.subr.mxu0 0.0
  %153 = vmatpush2.msra.mxu0 0.0
  %154 = vmatprep.subr.mxu0 0.0
  %155 = vmatpush2.msra.mxu0 0.0
  %156 = vmatprep.subr.mxu0 0.0
  %157 = vmatpush2.msra.mxu0 0.0
  %158 = vmatprep.subr.mxu0 0.0
  %159 = vmatpush2.msra.mxu0 0.0
  %160 = vmatprep.subr.mxu0 0.0
  %161 = vmatpush2.msra.mxu0 0.0
  %162 = vmatprep.mubr.f32.mxu0 0.0
  %163 = vmatmul.mubr.f32.gmra.mxu0 %v96
  %v164 = vpop.f32.mrf.mxu0
  %v165 = vadd.f32 %v92, %v164
  %v166 = vpop.f32.mrf.mxu0
  %167 = vdwg.mxu0
  %v168 = vlaneseq
  %v169 = vshrl.u32 %v168, 7
  %v170 = vsub.s32 0, %v169
  %v171 = vrot.slane %v18, %v170
  %v172 = vadd.f32 %v165, %v171
  %v173 = vld [vmem:[%s2 + $0x20] sm:$0xff]
  %v174 = vld [vmem:[%s2 + $0x28] sm:$0xff]
  %v175 = vld [vmem:[%s2 + $0x30] sm:$0xff]
  %v176 = vld [vmem:[%s2 + $0x38] sm:$0xff]
  %v177 = vld [vmem:[%s2 + $0x61] sm:$0x1]
  %v178 = vlaneseq
  %v179 = vshrl.u32 %v178, 7
  %v180 = vsub.s32 0, %v179
  %v181 = vrot.slane %v177, %v180
  %vm182 = vcmask 261120
  %v184 = vsel %vm182, %v172, 0
  %186 = vmatprep.subr.mxu0 0.0
  %187 = vmatpush1.msra.mxu0 0.0
  %188 = vmatprep.subr.mxu0 0.0
  %189 = vmatpush1.msra.mxu0 0.0
  %190 = vmatprep.subr.mxu0 0.0
  %191 = vmatpush1.msra.mxu0 0.0
  %192 = vmatprep.subr.mxu0 0.0
  %193 = vmatpush1.msra.mxu0 0.0
  %194 = vmatprep.subr.mxu0 0.0
  %195 = vmatpush1.msra.mxu0 0.0
  %196 = vmatprep.subr.mxu0 0.0
  %197 = vmatpush1.msra.mxu0 0.0
  %198 = vmatprep.subr.mxu0 0.0
  %199 = vmatpush1.msra.mxu0 0.0
  %200 = vmatprep.subr.mxu0 0.0
  %201 = vmatpush1.msra.mxu0 0.0
  %202 = vmatprep.subr.mxu0 0.0
  %203 = vmatpush1.msra.mxu0 0.0
  %204 = vmatprep.subr.mxu0 0.0
  %205 = vmatpush1.msra.mxu0 0.0
  %206 = vmatprep.subr.mxu0 0.0
  %207 = vmatpush1.msra.mxu0 0.0
  %208 = vmatprep.subr.mxu0 0.0
  %209 = vmatpush1.msra.mxu0 0.0
  %210 = vmatprep.subr.mxu0 0.0
  %211 = vmatpush1.msra.mxu0 %v176
  %212 = vmatprep.subr.mxu0 0.0
  %213 = vmatpush1.msra.mxu0 %v175
  %214 = vmatprep.subr.mxu0 0.0
  %215 = vmatpush1.msra.mxu0 %v174
  %216 = vmatprep.subr.mxu0 0.0
  %217 = vmatpush1.msra.mxu0 %v173
  %218 = vmatprep.subr.mxu0 0.0
  %219 = vmatpush2.msra.mxu0 0.0
  %220 = vmatprep.subr.mxu0 0.0
  %221 = vmatpush2.msra.mxu0 0.0
  %222 = vmatprep.subr.mxu0 0.0
  %223 = vmatpush2.msra.mxu0 0.0
  %224 = vmatprep.subr.mxu0 0.0
  %225 = vmatpush2.msra.mxu0 0.0
  %226 = vmatprep.subr.mxu0 0.0
  %227 = vmatpush2.msra.mxu0 0.0
  %228 = vmatprep.subr.mxu0 0.0
  %229 = vmatpush2.msra.mxu0 0.0
  %230 = vmatprep.subr.mxu0 0.0
  %231 = vmatpush2.msra.mxu0 0.0
  %232 = vmatprep.subr.mxu0 0.0
  %233 = vmatpush2.msra.mxu0 0.0
  %234 = vmatprep.subr.mxu0 0.0
  %235 = vmatpush2.msra.mxu0 0.0
  %236 = vmatprep.subr.mxu0 0.0
  %237 = vmatpush2.msra.mxu0 0.0
  %238 = vmatprep.subr.mxu0 0.0
  %239 = vmatpush2.msra.mxu0 0.0
  %240 = vmatprep.subr.mxu0 0.0
  %241 = vmatpush2.msra.mxu0 0.0
  %242 = vmatprep.subr.mxu0 0.0
  %243 = vmatpush2.msra.mxu0 0.0
  %244 = vmatprep.subr.mxu0 0.0
  %245 = vmatpush2.msra.mxu0 0.0
  %246 = vmatprep.subr.mxu0 0.0
  %247 = vmatpush2.msra.mxu0 0.0
  %248 = vmatprep.subr.mxu0 0.0
  %249 = vmatpush2.msra.mxu0 0.0
  %250 = vmatprep.mubr.f32.mxu0 0.0
  %251 = vmatmul.mubr.f32.gmra.mxu0 %v184
  %v252 = vpop.f32.mrf.mxu0
  %v253 = vadd.f32 %v181, %v252
  %v254 = vpop.f32.mrf.mxu0
  %255 = vdwg.mxu0
  %v256 = vmax.f32 %v253, 0.0
  %v257 = vld [vmem:[%s2 + $0x40] sm:$0xff]
  %v258 = vld [vmem:[%s2 + $0x48] sm:$0xff]
  %v259 = vld [vmem:[%s2 + $0x50] sm:$0xff]
  %v260 = vld [vmem:[%s2 + $0x58] sm:$0xff]
  %v261 = vld [vmem:[%s2 + $0x62] sm:$0x1]
  %v262 = vlaneseq
  %v263 = vshrl.u32 %v262, 7
  %v264 = vsub.s32 0, %v263
  %v265 = vrot.slane %v261, %v264
  %v267 = vsel %vm182, %v256, 0
  %269 = vmatprep.subr.mxu0 0.0
  %270 = vmatpush1.msra.mxu0 0.0
  %271 = vmatprep.subr.mxu0 0.0
  %272 = vmatpush1.msra.mxu0 0.0
  %273 = vmatprep.subr.mxu0 0.0
  %274 = vmatpush1.msra.mxu0 0.0
  %275 = vmatprep.subr.mxu0 0.0
  %276 = vmatpush1.msra.mxu0 0.0
  %277 = vmatprep.subr.mxu0 0.0
  %278 = vmatpush1.msra.mxu0 0.0
  %279 = vmatprep.subr.mxu0 0.0
  %280 = vmatpush1.msra.mxu0 0.0
  %281 = vmatprep.subr.mxu0 0.0
  %282 = vmatpush1.msra.mxu0 0.0
  %283 = vmatprep.subr.mxu0 0.0
  %284 = vmatpush1.msra.mxu0 0.0
  %285 = vmatprep.subr.mxu0 0.0
  %286 = vmatpush1.msra.mxu0 0.0
  %287 = vmatprep.subr.mxu0 0.0
  %288 = vmatpush1.msra.mxu0 0.0
  %289 = vmatprep.subr.mxu0 0.0
  %290 = vmatpush1.msra.mxu0 0.0
  %291 = vmatprep.subr.mxu0 0.0
  %292 = vmatpush1.msra.mxu0 0.0
  %293 = vmatprep.subr.mxu0 0.0
  %294 = vmatpush1.msra.mxu0 %v260
  %295 = vmatprep.subr.mxu0 0.0
  %296 = vmatpush1.msra.mxu0 %v259
  %297 = vmatprep.subr.mxu0 0.0
  %298 = vmatpush1.msra.mxu0 %v258
  %299 = vmatprep.subr.mxu0 0.0
  %300 = vmatpush1.msra.mxu0 %v257
  %301 = vmatprep.subr.mxu0 0.0
  %302 = vmatpush2.msra.mxu0 0.0
  %303 = vmatprep.subr.mxu0 0.0
  %304 = vmatpush2.msra.mxu0 0.0
  %305 = vmatprep.subr.mxu0 0.0
  %306 = vmatpush2.msra.mxu0 0.0
  %307 = vmatprep.subr.mxu0 0.0
  %308 = vmatpush2.msra.mxu0 0.0
  %309 = vmatprep.subr.mxu0 0.0
  %310 = vmatpush2.msra.mxu0 0.0
  %311 = vmatprep.subr.mxu0 0.0
  %312 = vmatpush2.msra.mxu0 0.0
  %313 = vmatprep.subr.mxu0 0.0
  %314 = vmatpush2.msra.mxu0 0.0
  %315 = vmatprep.subr.mxu0 0.0
  %316 = vmatpush2.msra.mxu0 0.0
  %317 = vmatprep.subr.mxu0 0.0
  %318 = vmatpush2.msra.mxu0 0.0
  %319 = vmatprep.subr.mxu0 0.0
  %320 = vmatpush2.msra.mxu0 0.0
  %321 = vmatprep.subr.mxu0 0.0
  %322 = vmatpush2.msra.mxu0 0.0
  %323 = vmatprep.subr.mxu0 0.0
  %324 = vmatpush2.msra.mxu0 0.0
  %325 = vmatprep.subr.mxu0 0.0
  %326 = vmatpush2.msra.mxu0 0.0
  %327 = vmatprep.subr.mxu0 0.0
  %328 = vmatpush2.msra.mxu0 0.0
  %329 = vmatprep.subr.mxu0 0.0
  %330 = vmatpush2.msra.mxu0 0.0
  %331 = vmatprep.subr.mxu0 0.0
  %332 = vmatpush2.msra.mxu0 0.0
  %333 = vmatprep.mubr.f32.mxu0 0.0
  %334 = vmatmul.mubr.f32.gmra.mxu0 %v267
  %v335 = vpop.f32.mrf.mxu0
  %v336 = vadd.f32 %v265, %v335
  %v337 = vpop.f32.mrf.mxu0
  %338 = vdwg.mxu0
  %v339 = vmax.f32 %v336, 0.0
  %v340 = vld [vmem:[%s2 + $0x63] sm:$0x1]
  %v341 = vld [vmem:[%s2 + $0x64] sm:$0x1]
  %v342 = vlaneseq
  %v343 = vshrl.u32 %v342, 7
  %v344 = vsub.s32 0, %v343
  %v345 = vrot.slane %v340, %v344
  %v346 = vmul.f32 %v339, %v345
  %v347 = vsel %vm182, %v346, 0.0
  %348 = vadd.xlane.f32.xlu0 %v347
  %v349 = vpop.xlane.xlu0 %348
  %v350 = vlaneseq
  %v351 = vshrl.u32 %v350, 7
  %v352 = vsub.s32 0, %v351
  %v353 = vrot.slane %v341, %v352
  %v354 = vadd.f32 %v349, %v353
  %v355 = vxor.u32 %v354, 2147483648
  %v356 = vmul.f32 %v355, 1.442695
  %v357 = vpow.pop %v356
  %v358 = vadd.f32 %v357, 1.0
  %v359 = vrcp.pop %v358
  %v360 = vmul.f32 1.0, %v359
  %vm361 = vcmask 7168
  %362 = vst.msk [vmem:[%s3] sm:$0xff] %vm361, %v360
  // Predicated region
  $region14: #{tpu_custom_call.1} parent=0 // pred_check
    _
  $region15: #{tpu_custom_call.1} parent=0 // pred_check_branch
    %364 = sbr.rel (0) target = $region17
  $region16: #{tpu_custom_call.1} parent=0 // pred_region
    _
  $region17: #{tpu_custom_call.1} parent=0 // pred_fallthru
    _
  // Predicated region
  $region18: #{tpu_custom_call.1} parent=0 // pred_check
    _
  $region19: #{tpu_custom_call.1} parent=0 // pred_check_branch
    %366 = sbr.rel (0) target = $region21
  $region20: #{tpu_custom_call.1} parent=0 // pred_region
    _
  $region21: #{tpu_custom_call.1} parent=0 // pred_fallthru
    _

</llo_original>
